<compile_context>
chip_gen: v7x
topology: tpu7x:2x2x1
jax: 0.10.0
libtpu: 0.0.40
codegen_flags: <defaults>
</compile_context>

<pallas_src>
import functools

import jax
import jax.numpy as jnp
import numpy as np
from jax.experimental import pallas as pl
from jax.experimental.pallas import tpu as pltpu


def _reflect_pool_matrix(n, kernel_size):
    """Linear operator (n, n): reflect-pad by k//2 then avg_pool1d(k, stride=1)."""
    p = kernel_size // 2
    assert kernel_size % 2 == 1, "kernel_size must be odd (output shape match)"
    assert p <= n - 1, "reflect padding requires padding <= dim - 1"
    idx = []
    for t in range(-p, n + p):
        if t < 0:
            s = -t
        elif t >= n:
            s = 2 * n - 2 - t
        else:
            s = t
        idx.append(s)
    P = np.zeros((n + 2 * p, n), dtype=np.float32)
    P[np.arange(n + 2 * p), idx] = 1.0
    S = np.zeros((n, n + 2 * p), dtype=np.float32)
    for i in range(n):
        S[i, i : i + kernel_size] = 1.0 / kernel_size
    return (S @ P).astype(np.float32)  # (n, n)


def _pick_block_n(n_imgs, hw, itemsize, budget_bytes=2 << 20):
    """Images per grid step: all of them if one block fits the per-buffer
    budget, otherwise the largest multiple-of-8 divisor that fits (a non-full
    second-minor block dim must be a multiple of 8)."""
    max_tn = max(1, budget_bytes // max(1, hw * itemsize))
    if n_imgs <= max_tn:
        return n_imgs
    best = None
    for cand in range(8, max_tn + 1, 8):
        if n_imgs % cand == 0:
            best = cand
    return best if best is not None else n_imgs


def _total_loss_kernel(
    pred_ref,      # (TN, HW)  batch_logits block (input dtype)
    target_ref,    # (TN, HW)  batch block (input dtype)
    kt_ref,        # (HW, HW)  kron(Lh, Lw)^T  fused reflect-pad avg-pool, f32
    z_ref,         # (Bp, D)   latent (zero-padded to Bp rows)
    out_ref,       # (1, 1)    total loss
    sabs_ref,      # (TN, HW)  scratch: running |pred - target|
    sstd_ref,      # (TN, HW)  scratch: running local_std
    sabstd_ref,    # (TN, HW)  scratch: running |pred - target| * local_std
    div_ref,       # (1, 1)    scratch: latent diversity loss
    *,
    weight_factor,
    min_distance,
    div_weight,
    n_total,
    batch_size,
    compute_div,
):
    n = pl.program_id(0)

    @pl.when(n == 0)
    def _init():
        sabs_ref[...] = jnp.zeros_like(sabs_ref)
        sstd_ref[...] = jnp.zeros_like(sstd_ref)
        sabstd_ref[...] = jnp.zeros_like(sabstd_ref)
        if compute_div:  # static: batch_size >= 2
            z = z_ref[...].astype(jnp.float32)                 # (Bp, D)
            norm = jnp.sqrt(jnp.sum(z * z, axis=1, keepdims=True))
            zn = z / jnp.maximum(norm, 1e-12)                  # F.normalize eps
            sim = jax.lax.dot_general(
                zn, zn, (((1,), (1,)), ((), ())),
                preferred_element_type=jnp.float32,
            )                                                  # (Bp, Bp)
            sim = jnp.clip(sim, -1.0, 1.0)
            rows = jax.lax.broadcasted_iota(jnp.int32, sim.shape, 0)
            cols = jax.lax.broadcasted_iota(jnp.int32, sim.shape, 1)
            valid = (rows != cols) & (rows < batch_size) & (cols < batch_size)
            vals = jnp.maximum(min_distance - (1.0 - sim), 0.0)
            div = jnp.sum(jnp.where(valid, vals, 0.0)) / float(
                batch_size * (batch_size - 1))
            div_ref[...] = jnp.zeros_like(div_ref) + div
        else:
            div_ref[...] = jnp.zeros_like(div_ref)

    # Lane-dense block compute: everything is (TN, HW) with HW on the lanes.
    x = target_ref[...].astype(jnp.float32)
    pred = pred_ref[...].astype(jnp.float32)
    kt = kt_ref[...]

    # Reflect-pad + avg_pool2d(kernel, stride=1) == one fused MXU matmul.
    local_mean = jnp.dot(x, kt, preferred_element_type=jnp.float32)
    diff = x - local_mean
    local_var = jnp.dot(diff * diff, kt, preferred_element_type=jnp.float32)
    local_std = jnp.sqrt(local_var + 1e-6)
    base = jnp.abs(pred - x)

    # Elementwise VPU accumulation only; reductions are deferred to finalize.
    sabs_ref[...] = sabs_ref[...] + base
    sstd_ref[...] = sstd_ref[...] + local_std
    sabstd_ref[...] = sabstd_ref[...] + base * local_std

    @pl.when(n == pl.num_programs(0) - 1)
    def _finalize():
        sabs = jnp.sum(sabs_ref[...])
        sstd = jnp.sum(sstd_ref[...])
        sabstd = jnp.sum(sabstd_ref[...])
        rec_loss = sabs / n_total + weight_factor * sabstd / sstd
        out_ref[...] = rec_loss + div_weight * div_ref[...]


def total_loss(batch, latent, batch_logits, *, kernel_size, weight_factor,
               min_distance, div_weight):
    B, C, H, W = batch.shape
    N = B * C
    HW = H * W

    lh = _reflect_pool_matrix(H, kernel_size)          # (H, H) np
    lw = _reflect_pool_matrix(W, kernel_size)          # (W, W) np
    # Fused 2-D pooling operator; only used for small images.
    # TODO(synk): separable (Lh, Lw^T) in-kernel path for large H*W.
    assert HW * HW * 4 <= (32 << 20), "fused pool operator too large for VMEM"
    kt = jnp.asarray(np.kron(lh, lw).T)                # (HW, HW) f32

    # Keep the input dtype (no wrapper-side upcast); flatten images to rows.
    pred = batch_logits.reshape(N, HW)
    target = batch.reshape(N, HW)

    # Latent: zero-pad rows to a multiple of 8 (aligned sublanes); masked
    # in-kernel so the semantics are unchanged.
    B_lat, D = latent.shape
    B_pad = max(8, ((B_lat + 7) // 8) * 8)
    if B_pad != B_lat:
        z = jnp.zeros((B_pad, D), latent.dtype).at[:B_lat].set(latent)
    else:
        z = latent

    TN = _pick_block_n(N, HW, jnp.dtype(target.dtype).itemsize)
    if N % TN != 0:
        TN = N
    grid = (N // TN,)
    n_total = float(N * HW)
    compute_div = B_lat >= 2

    kernel = functools.partial(
        _total_loss_kernel,
        weight_factor=float(weight_factor),
        min_distance=float(min_distance),
        div_weight=float(div_weight),
        n_total=n_total,
        batch_size=int(B_lat),
        compute_div=compute_div,
    )

    out = pl.pallas_call(
        kernel,
        out_shape=jax.ShapeDtypeStruct((1, 1), jnp.float32),
        grid_spec=pltpu.PrefetchScalarGridSpec(
            num_scalar_prefetch=0,
            grid=grid,
            in_specs=[
                pl.BlockSpec((TN, HW), lambda n: (n, 0)),       # pred block
                pl.BlockSpec((TN, HW), lambda n: (n, 0)),       # target block
                pl.BlockSpec((HW, HW), lambda n: (0, 0)),       # fused pool op
                pl.BlockSpec((B_pad, D), lambda n: (0, 0)),     # latent
            ],
            out_specs=pl.BlockSpec((1, 1), lambda n: (0, 0)),
            scratch_shapes=[pltpu.VMEM((TN, HW), jnp.float32)] * 3
                         + [pltpu.VMEM((1, 1), jnp.float32)],
        ),
        compiler_params=pltpu.CompilerParams(
            dimension_semantics=("arbitrary",),
            vmem_limit_bytes=32 * 1024 * 1024,
        ),
    )(pred, target, kt, z)
    return out[0, 0]


def reference_total_loss(batch, latent, batch_logits, *, kernel_size,
                         weight_factor, min_distance, div_weight):
    """Pure-JAX reference mirroring the PyTorch module."""
    B, C, H, W = batch.shape
    lh = jnp.asarray(_reflect_pool_matrix(H, kernel_size))
    lw = jnp.asarray(_reflect_pool_matrix(W, kernel_size))
    x = batch.reshape(B * C, H, W).astype(jnp.float32)
    pred = batch_logits.reshape(B * C, H, W).astype(jnp.float32)

    pool = lambda a: jnp.einsum("ia,nab,jb->nij", lh, a, lw)
    lm = pool(x)
    lv = pool((x - lm) ** 2)
    lstd = jnp.sqrt(lv + 1e-6)
    wmap = 1.0 + weight_factor * (lstd / lstd.mean())
    rec = (jnp.abs(pred - x) * wmap).mean()

    bsz = latent.shape[0]
    if bsz <= 1:
        div = 0.0
    else:
        zn = latent / jnp.maximum(
            jnp.linalg.norm(latent, axis=1, keepdims=True), 1e-12)
        sim = jnp.clip(zn @ zn.T, -1.0, 1.0)
        mask = ~jnp.eye(bsz, dtype=bool)
        vals = jnp.maximum(min_distance - (1.0 - sim), 0.0)
        div = jnp.sum(jnp.where(mask, vals, 0.0)) / (bsz * (bsz - 1))
    return rec + div_weight * div


if __name__ == "__main__":
    # TotalLoss(kernel_size=5, weight_factor=2.0, min_distance=0.1, div_weight=0.5)
    kernel_size, weight_factor, min_distance, div_weight = 5, 2.0, 0.1, 0.5
    B, C, H, W, D = 2, 4, 16, 16, 32

    key = jax.random.PRNGKey(0)
    k1, k2, k3 = jax.random.split(key, 3)
    batch = jax.random.normal(k1, (B, C, H, W), dtype=jnp.float32)
    batch_logits = jax.random.normal(k2, (B, C, H, W), dtype=jnp.float32)
    latent = jax.random.normal(k3, (B, D), dtype=jnp.float32)

    out = total_loss(
        batch, latent, batch_logits,
        kernel_size=kernel_size, weight_factor=weight_factor,
        min_distance=min_distance, div_weight=div_weight,
    )
    out = jax.block_until_ready(out)

    ref = reference_total_loss(
        batch, latent, batch_logits,
        kernel_size=kernel_size, weight_factor=weight_factor,
        min_distance=min_distance, div_weight=div_weight,
    )
    assert jnp.isfinite(out)
    assert abs(float(out) - float(ref)) <= 1e-3 * max(1.0, abs(float(ref))), (
        float(out), float(ref))
    print("KERNEL_OK")
</pallas_src>

<mosaic_0001>
module attributes {stable_mosaic.version = 11 : i64} {
  func.func @_total_loss_kernel(%arg0: i32, %arg1: memref<8x256xf32, #tpu.memory_space<vmem>>, %arg2: memref<8x256xf32, #tpu.memory_space<vmem>>, %arg3: memref<256x256xf32, #tpu.memory_space<vmem>>, %arg4: memref<8x32xf32, #tpu.memory_space<vmem>>, %arg5: memref<1x1xf32, #tpu.memory_space<vmem>>, %arg6: memref<8x256xf32, #tpu.memory_space<vmem>>, %arg7: memref<8x256xf32, #tpu.memory_space<vmem>>, %arg8: memref<8x256xf32, #tpu.memory_space<vmem>>, %arg9: memref<1x1xf32, #tpu.memory_space<vmem>>) attributes {dimension_semantics = [#tpu.dimension_semantics<arbitrary>], iteration_bounds = array<i64: 1>, scalar_prefetch = 0 : i64, scratch_operands = 4 : i64, tpu.core_type = #tpu.core_type<tc>, window_params = [{transform_indices = @transform_0, window_bounds = array<i64: 8, 256>}, {transform_indices = @transform_1, window_bounds = array<i64: 8, 256>}, {pipeline_mode = #tpu.pipeline_mode<synchronous>, transform_indices = @transform_2, window_bounds = array<i64: 256, 256>}, {pipeline_mode = #tpu.pipeline_mode<synchronous>, transform_indices = @transform_3, window_bounds = array<i64: 8, 32>}, {pipeline_mode = #tpu.pipeline_mode<synchronous>, transform_indices = @transform_4, window_bounds = array<i64: 1, 1>}]} {
    %c0_i32 = arith.constant 0 : i32
    %0 = arith.cmpi eq, %arg0, %c0_i32 : i32
    %1 = arith.extui %0 : i1 to i32
    %c0_i32_0 = arith.constant 0 : i32
    %2 = arith.cmpi ne, %1, %c0_i32_0 : i32
    scf.if %2 {
      %cst_22 = arith.constant 0.000000e+00 : f32
      %28 = vector.broadcast %cst_22 : f32 to vector<8x256xf32>
      %c0_23 = arith.constant 0 : index
      %c0_24 = arith.constant 0 : index
      %29 = vector.load %arg6[%c0_23, %c0_24] : memref<8x256xf32, #tpu.memory_space<vmem>>, vector<8x256xf32>
      tpu.vector_store %arg6[%c0_23, %c0_24], %28 {strides = array<i32>} : memref<8x256xf32, #tpu.memory_space<vmem>>, vector<8x256xf32>,
      %cst_25 = arith.constant 0.000000e+00 : f32
      %30 = vector.broadcast %cst_25 : f32 to vector<8x256xf32>
      %c0_26 = arith.constant 0 : index
      %c0_27 = arith.constant 0 : index
      %31 = vector.load %arg7[%c0_26, %c0_27] : memref<8x256xf32, #tpu.memory_space<vmem>>, vector<8x256xf32>
      tpu.vector_store %arg7[%c0_26, %c0_27], %30 {strides = array<i32>} : memref<8x256xf32, #tpu.memory_space<vmem>>, vector<8x256xf32>,
      %cst_28 = arith.constant 0.000000e+00 : f32
      %32 = vector.broadcast %cst_28 : f32 to vector<8x256xf32>
      %c0_29 = arith.constant 0 : index
      %c0_30 = arith.constant 0 : index
      %33 = vector.load %arg8[%c0_29, %c0_30] : memref<8x256xf32, #tpu.memory_space<vmem>>, vector<8x256xf32>
      tpu.vector_store %arg8[%c0_29, %c0_30], %32 {strides = array<i32>} : memref<8x256xf32, #tpu.memory_space<vmem>>, vector<8x256xf32>,
      %c0_31 = arith.constant 0 : index
      %c0_32 = arith.constant 0 : index
      %34 = vector.load %arg4[%c0_31, %c0_32] : memref<8x32xf32, #tpu.memory_space<vmem>>, vector<8x32xf32>
      %35 = arith.mulf %34, %34 : vector<8x32xf32>
      %cst_33 = arith.constant dense<0.000000e+00> : vector<8xf32>
      %36 = vector.multi_reduction <add>, %35, %cst_33 [1] : vector<8x32xf32> to vector<8xf32>
      %37 = vector.shape_cast %36 : vector<8xf32> to vector<8x1xf32>
      %38 = math.sqrt %37 : vector<8x1xf32>
      %cst_34 = arith.constant 9.99999996E-13 : f32
      %39 = vector.broadcast %cst_34 : f32 to vector<8x1xf32>
      %40 = arith.maximumf %38, %39 : vector<8x1xf32>
      %41 = vector.broadcast %40 : vector<8x1xf32> to vector<8x32xf32>
      %42 = arith.divf %34, %41 : vector<8x32xf32>
      %cst_35 = arith.constant dense<0.000000e+00> : vector<8x8xf32>
      %43 = tpu.matmul %42, %42, %cst_35 {dimension_numbers = #tpu.dot_dimension_numbers<[1], [1], [0], [0], [0, 0, 1, 0], [], []>} : vector<8x32xf32>, vector<8x32xf32>, vector<8x8xf32> -> vector<8x8xf32>
      %cst_36 = arith.constant -1.000000e+00 : f32
      %cst_37 = arith.constant 1.000000e+00 : f32
      %44 = vector.broadcast %cst_36 : f32 to vector<8x8xf32>
      %45 = arith.maximumf %44, %43 : vector<8x8xf32>
      %46 = vector.broadcast %cst_37 : f32 to vector<8x8xf32>
      %47 = arith.minimumf %46, %45 : vector<8x8xf32>
      %48 = tpu.iota {dimensions = array<i32: 0>} : vector<8x8xi32>
      %49 = tpu.iota {dimensions = array<i32: 1>} : vector<8x8xi32>
      %50 = arith.cmpi ne, %48, %49 : vector<8x8xi32>
      %c2_i32 = arith.constant 2 : i32
      %51 = vector.broadcast %c2_i32 : i32 to vector<8x8xi32>
      %52 = arith.cmpi slt, %48, %51 : vector<8x8xi32>
      %53 = arith.andi %50, %52 : vector<8x8xi1>
      %c2_i32_38 = arith.constant 2 : i32
      %54 = vector.broadcast %c2_i32_38 : i32 to vector<8x8xi32>
      %55 = arith.cmpi slt, %49, %54 : vector<8x8xi32>
      %56 = arith.andi %53, %55 : vector<8x8xi1>
      %cst_39 = arith.constant 1.000000e+00 : f32
      %57 = vector.broadcast %cst_39 : f32 to vector<8x8xf32>
      %58 = arith.subf %57, %47 : vector<8x8xf32>
      %cst_40 = arith.constant 1.000000e-01 : f32
      %59 = vector.broadcast %cst_40 : f32 to vector<8x8xf32>
      %60 = arith.subf %59, %58 : vector<8x8xf32>
      %cst_41 = arith.constant 0.000000e+00 : f32
      %61 = vector.broadcast %cst_41 : f32 to vector<8x8xf32>
      %62 = arith.maximumf %60, %61 : vector<8x8xf32>
      %cst_42 = arith.constant 0.000000e+00 : f32
      %63 = vector.broadcast %cst_42 : f32 to vector<8x8xf32>
      %64 = arith.select %56, %62, %63 : vector<8x8xi1>, vector<8x8xf32>
      %65 = vector.shape_cast %64 : vector<8x8xf32> to vector<1x8x8xf32>
      %cst_43 = arith.constant dense<0.000000e+00> : vector<1xf32>
      %66 = vector.multi_reduction <add>, %65, %cst_43 [1, 2] : vector<1x8x8xf32> to vector<1xf32>
      %67 = vector.shape_cast %66 : vector<1xf32> to vector<1x1x1xf32>
      %68 = vector.extract %67[0, 0, 0] : f32 from vector<1x1x1xf32>
      %cst_44 = arith.constant 2.000000e+00 : f32
      %69 = arith.divf %68, %cst_44 : f32
      %cst_45 = arith.constant 0.000000e+00 : f32
      %70 = vector.broadcast %cst_45 : f32 to vector<1x1xf32>
      %71 = vector.broadcast %69 : f32 to vector<1x1xf32>
      %72 = arith.addf %70, %71 : vector<1x1xf32>
      %c0_46 = arith.constant 0 : index
      %c0_47 = arith.constant 0 : index
      %73 = vector.load %arg9[%c0_46, %c0_47] : memref<1x1xf32, #tpu.memory_space<vmem>>, vector<1x1xf32>
      tpu.vector_store %arg9[%c0_46, %c0_47], %72 {strides = array<i32>} : memref<1x1xf32, #tpu.memory_space<vmem>>, vector<1x1xf32>,
    } else {
    }
    %c0 = arith.constant 0 : index
    %c0_1 = arith.constant 0 : index
    %3 = vector.load %arg2[%c0, %c0_1] : memref<8x256xf32, #tpu.memory_space<vmem>>, vector<8x256xf32>
    %c0_2 = arith.constant 0 : index
    %c0_3 = arith.constant 0 : index
    %4 = vector.load %arg1[%c0_2, %c0_3] : memref<8x256xf32, #tpu.memory_space<vmem>>, vector<8x256xf32>
    %c0_4 = arith.constant 0 : index
    %c0_5 = arith.constant 0 : index
    %5 = vector.load %arg3[%c0_4, %c0_5] : memref<256x256xf32, #tpu.memory_space<vmem>>, vector<256x256xf32>
    %cst = arith.constant dense<0.000000e+00> : vector<8x256xf32>
    %6 = tpu.matmul %3, %5, %cst {dimension_numbers = #tpu.dot_dimension_numbers<[1], [0], [0], [1], [0, 0, 1, 1], [], []>} : vector<8x256xf32>, vector<256x256xf32>, vector<8x256xf32> -> vector<8x256xf32>
    %7 = arith.subf %3, %6 : vector<8x256xf32>
    %8 = arith.mulf %7, %7 : vector<8x256xf32>
    %cst_6 = arith.constant dense<0.000000e+00> : vector<8x256xf32>
    %9 = tpu.matmul %8, %5, %cst_6 {dimension_numbers = #tpu.dot_dimension_numbers<[1], [0], [0], [1], [0, 0, 1, 1], [], []>} : vector<8x256xf32>, vector<256x256xf32>, vector<8x256xf32> -> vector<8x256xf32>
    %cst_7 = arith.constant 9.99999997E-7 : f32
    %10 = vector.broadcast %cst_7 : f32 to vector<8x256xf32>
    %11 = arith.addf %9, %10 : vector<8x256xf32>
    %12 = math.sqrt %11 : vector<8x256xf32>
    %13 = arith.subf %4, %3 : vector<8x256xf32>
    %14 = math.absf %13 : vector<8x256xf32>
    %c0_8 = arith.constant 0 : index
    %c0_9 = arith.constant 0 : index
    %15 = vector.load %arg6[%c0_8, %c0_9] : memref<8x256xf32, #tpu.memory_space<vmem>>, vector<8x256xf32>
    %16 = arith.addf %15, %14 : vector<8x256xf32>
    %c0_10 = arith.constant 0 : index
    %c0_11 = arith.constant 0 : index
    %17 = vector.load %arg6[%c0_10, %c0_11] : memref<8x256xf32, #tpu.memory_space<vmem>>, vector<8x256xf32>
    tpu.vector_store %arg6[%c0_10, %c0_11], %16 {strides = array<i32>} : memref<8x256xf32, #tpu.memory_space<vmem>>, vector<8x256xf32>,
    %c0_12 = arith.constant 0 : index
    %c0_13 = arith.constant 0 : index
    %18 = vector.load %arg7[%c0_12, %c0_13] : memref<8x256xf32, #tpu.memory_space<vmem>>, vector<8x256xf32>
    %19 = arith.addf %18, %12 : vector<8x256xf32>
    %c0_14 = arith.constant 0 : index
    %c0_15 = arith.constant 0 : index
    %20 = vector.load %arg7[%c0_14, %c0_15] : memref<8x256xf32, #tpu.memory_space<vmem>>, vector<8x256xf32>
    tpu.vector_store %arg7[%c0_14, %c0_15], %19 {strides = array<i32>} : memref<8x256xf32, #tpu.memory_space<vmem>>, vector<8x256xf32>,
    %c0_16 = arith.constant 0 : index
    %c0_17 = arith.constant 0 : index
    %21 = vector.load %arg8[%c0_16, %c0_17] : memref<8x256xf32, #tpu.memory_space<vmem>>, vector<8x256xf32>
    %22 = arith.mulf %14, %12 : vector<8x256xf32>
    %23 = arith.addf %21, %22 : vector<8x256xf32>
    %c0_18 = arith.constant 0 : index
    %c0_19 = arith.constant 0 : index
    %24 = vector.load %arg8[%c0_18, %c0_19] : memref<8x256xf32, #tpu.memory_space<vmem>>, vector<8x256xf32>
    tpu.vector_store %arg8[%c0_18, %c0_19], %23 {strides = array<i32>} : memref<8x256xf32, #tpu.memory_space<vmem>>, vector<8x256xf32>,
    %c0_i32_20 = arith.constant 0 : i32
    %25 = arith.cmpi eq, %arg0, %c0_i32_20 : i32
    %26 = arith.extui %25 : i1 to i32
    %c0_i32_21 = arith.constant 0 : i32
    %27 = arith.cmpi ne, %26, %c0_i32_21 : i32
    scf.if %27 {
      %c0_22 = arith.constant 0 : index
      %c0_23 = arith.constant 0 : index
      %28 = vector.load %arg6[%c0_22, %c0_23] : memref<8x256xf32, #tpu.memory_space<vmem>>, vector<8x256xf32>
      %29 = vector.shape_cast %28 : vector<8x256xf32> to vector<1x8x256xf32>
      %cst_24 = arith.constant dense<0.000000e+00> : vector<1xf32>
      %30 = vector.multi_reduction <add>, %29, %cst_24 [1, 2] : vector<1x8x256xf32> to vector<1xf32>
      %31 = vector.shape_cast %30 : vector<1xf32> to vector<1x1x1xf32>
      %32 = vector.extract %31[0, 0, 0] : f32 from vector<1x1x1xf32>
      %c0_25 = arith.constant 0 : index
      %c0_26 = arith.constant 0 : index
      %33 = vector.load %arg7[%c0_25, %c0_26] : memref<8x256xf32, #tpu.memory_space<vmem>>, vector<8x256xf32>
      %34 = vector.shape_cast %33 : vector<8x256xf32> to vector<1x8x256xf32>
      %cst_27 = arith.constant dense<0.000000e+00> : vector<1xf32>
      %35 = vector.multi_reduction <add>, %34, %cst_27 [1, 2] : vector<1x8x256xf32> to vector<1xf32>
      %36 = vector.shape_cast %35 : vector<1xf32> to vector<1x1x1xf32>
      %37 = vector.extract %36[0, 0, 0] : f32 from vector<1x1x1xf32>
      %c0_28 = arith.constant 0 : index
      %c0_29 = arith.constant 0 : index
      %38 = vector.load %arg8[%c0_28, %c0_29] : memref<8x256xf32, #tpu.memory_space<vmem>>, vector<8x256xf32>
      %39 = vector.shape_cast %38 : vector<8x256xf32> to vector<1x8x256xf32>
      %cst_30 = arith.constant dense<0.000000e+00> : vector<1xf32>
      %40 = vector.multi_reduction <add>, %39, %cst_30 [1, 2] : vector<1x8x256xf32> to vector<1xf32>
      %41 = vector.shape_cast %40 : vector<1xf32> to vector<1x1x1xf32>
      %42 = vector.extract %41[0, 0, 0] : f32 from vector<1x1x1xf32>
      %cst_31 = arith.constant 2.048000e+03 : f32
      %43 = arith.divf %32, %cst_31 : f32
      %cst_32 = arith.constant 2.000000e+00 : f32
      %44 = arith.mulf %cst_32, %42 : f32
      %45 = arith.divf %44, %37 : f32
      %46 = arith.addf %43, %45 : f32
      %c0_33 = arith.constant 0 : index
      %c0_34 = arith.constant 0 : index
      %47 = vector.load %arg9[%c0_33, %c0_34] : memref<1x1xf32, #tpu.memory_space<vmem>>, vector<1x1xf32>
      %cst_35 = arith.constant 5.000000e-01 : f32
      %48 = vector.broadcast %cst_35 : f32 to vector<1x1xf32>
      %49 = arith.mulf %48, %47 : vector<1x1xf32>
      %50 = vector.broadcast %46 : f32 to vector<1x1xf32>
      %51 = arith.addf %50, %49 : vector<1x1xf32>
      %c0_36 = arith.constant 0 : index
      %c0_37 = arith.constant 0 : index
      %52 = vector.load %arg5[%c0_36, %c0_37] : memref<1x1xf32, #tpu.memory_space<vmem>>, vector<1x1xf32>
      tpu.vector_store %arg5[%c0_36, %c0_37], %51 {strides = array<i32>} : memref<1x1xf32, #tpu.memory_space<vmem>>, vector<1x1xf32>,
    } else {
    }
    return
  }
  func.func @transform_0(%arg0: i32) -> (i32, i32) {
    %c0_i32 = arith.constant 0 : i32
    %c0_i32_0 = arith.constant 0 : i32
    return %arg0, %c0_i32 : i32, i32
  }
  func.func @transform_1(%arg0: i32) -> (i32, i32) {
    %c0_i32 = arith.constant 0 : i32
    %c0_i32_0 = arith.constant 0 : i32
    return %arg0, %c0_i32 : i32, i32
  }
  func.func @transform_2(%arg0: i32) -> (i32, i32) {
    %c0_i32 = arith.constant 0 : i32
    %c0_i32_0 = arith.constant 0 : i32
    %c0_i32_1 = arith.constant 0 : i32
    return %c0_i32, %c0_i32_0 : i32, i32
  }
  func.func @transform_3(%arg0: i32) -> (i32, i32) {
    %c0_i32 = arith.constant 0 : i32
    %c0_i32_0 = arith.constant 0 : i32
    %c0_i32_1 = arith.constant 0 : i32
    return %c0_i32, %c0_i32_0 : i32, i32
  }
  func.func @transform_4(%arg0: i32) -> (i32, i32) {
    %c0_i32 = arith.constant 0 : i32
    %c0_i32_0 = arith.constant 0 : i32
    %c0_i32_1 = arith.constant 0 : i32
    return %c0_i32, %c0_i32_0 : i32, i32
  }
}

</mosaic_0001>

<llo_original>
// kernel: tpu_custom_call.1
$region0: #{tpu_custom_call.1}
  #allocation0 [shape = 'u32[]', space=smem, size = 0x4, offset = 0x4, fixed_abs, tag = 'smem constant byte address 0x4 - core index']
  #allocation1 [shape = 'u32[144,128]{1,0:T(1,128)}', space=vmem, size = 0x12000, scoped, tag = 'internal scratch']
  #allocation2 [shape = 'f32[8,256]{1,0:T(8,128)}', space=vmem, size = 0x2000, scoped, tag = 'scratch operand']
  #allocation3 [shape = 'f32[8,256]{1,0:T(8,128)}', space=vmem, size = 0x2000, scoped, tag = 'scratch operand']
  #allocation4 [shape = 'f32[8,256]{1,0:T(8,128)}', space=vmem, size = 0x2000, scoped, tag = 'scratch operand']
  #allocation5 [shape = 'f32[1,1]{1,0:T(1,128)}', space=vmem, size = 0x200, scoped, tag = 'scratch operand']
  %s0 = inlined_call_operand.hbm [shape: f32[8,256], index: 0, kind: input, shape index: {}]
  %s1 = inlined_call_operand.hbm [shape: f32[8,256], index: 1, kind: input, shape index: {}]
  %s2 = inlined_call_operand.hbm [shape: f32[256,256], index: 2, kind: input, shape index: {}]
  %s3 = inlined_call_operand.vmem [shape: f32[8,32], index: 3, kind: input, shape index: {}]
  %s4 = inlined_call_operand.hbm [shape: f32[1,1], index: 4, kind: output, shape index: {}]
  %s5 = sld [smem:[#allocation0]]
  $region46: #{tpu_custom_call.1} parent=0
    _
  %s7 = ssub.s32 1, %s5
  %s8 = scalar_select 0, %s7, %s5
  $region1: #{tpu_custom_call.1} parent=0
    #allocation6 [shape = 'u8[8192]{0}', space=vmem, size = 0x2000, scoped, tag = 'input window, operand 0, single buffered']
    #allocation7 [shape = 's32[1]{0}', space=sflag, size = 0x4, scoped, tag = 'scoped memory for tpu_custom_call.1']
    #allocation8 [shape = 's32[1]{0}', space=sflag, size = 0x4, scoped, tag = 'scoped memory for tpu_custom_call.1']
    #allocation9 [shape = 'u8[8192]{0}', space=vmem, size = 0x2000, scoped, tag = 'input window, operand 1, single buffered']
    #allocation10 [shape = 's32[1]{0}', space=sflag, size = 0x4, scoped, tag = 'scoped memory for tpu_custom_call.1']
    #allocation11 [shape = 'u8[262144]{0}', space=vmem, size = 0x40000, scoped, tag = 'input window, operand 2, single buffered']
    #allocation12 [shape = 'u8[512]{0}', space=vmem, size = 0x400, scoped, tag = 'output window, operand 0, single buffered']
    %9 = vsyncpa [#allocation7], 0
    %10 = vsyncpa [#allocation10], 0
    %11 = vsyncpa [#allocation8], 0
    // Predicated region
    $region2: #{tpu_custom_call.1} parent=1 // pred_check
      _
    $region3: #{tpu_custom_call.1} parent=1 // pred_check_branch
      %13 = sbr.rel (0) target = $region5
    $region4: #{tpu_custom_call.1} parent=1 // pred_region
      %s15 = ssub.s32 256, 256
      %16 = vsyncadd [#allocation7], %s15
      %s18 = sshll.u32 [#allocation6], 4
      %s19 = int_to_ptr.vmem [resolvable:$true] %s18
      %21 = dma.hbm_to_vmem [thread:$0]  %s0, 256, %s19, [#allocation7]
    $region5: #{tpu_custom_call.1} parent=1 // pred_fallthru
      _
    // Predicated region
    $region6: #{tpu_custom_call.1} parent=1 // pred_check
      _
    $region7: #{tpu_custom_call.1} parent=1 // pred_check_branch
      %23 = sbr.rel (0) target = $region9
    $region8: #{tpu_custom_call.1} parent=1 // pred_region
      %s25 = ssub.s32 256, 256
      %26 = vsyncadd [#allocation10], %s25
      %s28 = sshll.u32 [#allocation9], 4
      %s29 = int_to_ptr.vmem [resolvable:$true] %s28
      %31 = dma.hbm_to_vmem [thread:$0]  %s1, 256, %s29, [#allocation10]
    $region9: #{tpu_custom_call.1} parent=1 // pred_fallthru
      _
    // Predicated region
    $region10: #{tpu_custom_call.1} parent=1 // pred_check
      _
    $region11: #{tpu_custom_call.1} parent=1 // pred_check_branch
      %33 = sbr.rel (0) target = $region13
    $region12: #{tpu_custom_call.1} parent=1 // pred_region
      %s35 = ssub.s32 8192, 8192
      %36 = vsyncadd [#allocation10], %s35
      %s37 = sshll.u32 [#allocation11], 4
      %s38 = int_to_ptr.vmem [resolvable:$true] %s37
      %43 = dma.hbm_to_vmem [thread:$0]  %s2, 8192, %s38, [#allocation10], 256, 256, 16
    $region13: #{tpu_custom_call.1} parent=1 // pred_fallthru
      _
    // Predicated region
    $region14: #{tpu_custom_call.1} parent=1 // pred_check
      _
    $region15: #{tpu_custom_call.1} parent=1 // pred_check_branch
      %45 = sbr.rel (0) target = $region17
    $region16: #{tpu_custom_call.1} parent=1 // pred_region
      _
    $region17: #{tpu_custom_call.1} parent=1 // pred_fallthru
      _
    // Predicated region
    $region18: #{tpu_custom_call.1} parent=1 // pred_check
      _
    $region19: #{tpu_custom_call.1} parent=1 // pred_check_branch
      %47 = sbr.rel (0) target = $region21
    $region20: #{tpu_custom_call.1} parent=1 // pred_region
      %48 = dma.done [#allocation7], 256
    $region21: #{tpu_custom_call.1} parent=1 // pred_fallthru
      _
    // Predicated region
    $region22: #{tpu_custom_call.1} parent=1 // pred_check
      _
    $region23: #{tpu_custom_call.1} parent=1 // pred_check_branch
      %50 = sbr.rel (0) target = $region25
    $region24: #{tpu_custom_call.1} parent=1 // pred_region
      %51 = dma.done [#allocation10], 256
    $region25: #{tpu_custom_call.1} parent=1 // pred_fallthru
      _
    // Predicated region
    $region26: #{tpu_custom_call.1} parent=1 // pred_check
      _
    $region27: #{tpu_custom_call.1} parent=1 // pred_check_branch
      %53 = sbr.rel (0) target = $region29
    $region28: #{tpu_custom_call.1} parent=1 // pred_region
      %54 = dma.done [#allocation10], 8192
    $region29: #{tpu_custom_call.1} parent=1 // pred_fallthru
      _
    %p55 = scmp.eq.s32.totalorder 0, 0
    // Predicated region
    $region30: #{tpu_custom_call.1} parent=1 // pred_check
      %p56 = pneg %p55
    $region31: #{tpu_custom_call.1} parent=1 // pred_check_branch
      %58 = sbr.rel (%p56) target = $region33
    $region32: #{tpu_custom_call.1} parent=1 // pred_region
      %59 = vst [vmem:[#allocation2] sm:$0xff] 0.0
      %60 = vst [vmem:[#allocation2 + $0x8] sm:$0xff] 0.0
      %61 = vst [vmem:[#allocation3] sm:$0xff] 0.0
      %62 = vst [vmem:[#allocation3 + $0x8] sm:$0xff] 0.0
      %63 = vst [vmem:[#allocation4] sm:$0xff] 0.0
      %64 = vst [vmem:[#allocation4 + $0x8] sm:$0xff] 0.0
      %v65 = vld [vmem:[%s3] sm:$0xff]
      %v66 = vmul.f32 %v65, %v65
      %vm67 = vcmask 261120
      %v68 = vsel %vm67, %v66, 0.0
      %69 = vadd.xlane.f32.xlu0 %v68
      %v70 = vpop.xlane.xlu0 %69
      %v71 = vrsqrt.pop %v70
      %v72 = vmul.f32 %v70, %v71
      %vm73 = vcmp.eq.f32.partialorder %v70, inf
      %v74 = vsel %vm73, %v70, %v72
      %vm75 = vcmp.eq.f32.partialorder %v70, 0.0
      %v76 = vand.u32 %v70, 2147483648
      %v77 = vsel %vm75, %v76, %v74
      %v78 = vmax.f32 %v77, 1e-12
      %v79 = vrcp.pop %v78
      %v80 = vmul.f32 %v65, %v79
      %v82 = vsel %vm67, %v80, 0
      %84 = vmatprep.subr.mxu0 0.0
      %85 = vmatpush1.xpose.msra.mxu0 %v82
      %86 = vmatprep.subr.mxu0 0.0
      %87 = vmatpush1.xpose.msra.mxu0 0.0
      %88 = vmatprep.subr.mxu0 0.0
      %89 = vmatpush1.xpose.msra.mxu0 0.0
      %90 = vmatprep.subr.mxu0 0.0
      %91 = vmatpush1.xpose.msra.mxu0 0.0
      %92 = vmatprep.subr.mxu0 0.0
      %93 = vmatpush1.xpose.msra.mxu0 0.0
      %94 = vmatprep.subr.mxu0 0.0
      %95 = vmatpush1.xpose.msra.mxu0 0.0
      %96 = vmatprep.subr.mxu0 0.0
      %97 = vmatpush1.xpose.msra.mxu0 0.0
      %98 = vmatprep.subr.mxu0 0.0
      %99 = vmatpush1.xpose.msra.mxu0 0.0
      %100 = vmatprep.subr.mxu0 0.0
      %101 = vmatpush1.xpose.msra.mxu0 0.0
      %102 = vmatprep.subr.mxu0 0.0
      %103 = vmatpush1.xpose.msra.mxu0 0.0
      %104 = vmatprep.subr.mxu0 0.0
      %105 = vmatpush1.xpose.msra.mxu0 0.0
      %106 = vmatprep.subr.mxu0 0.0
      %107 = vmatpush1.xpose.msra.mxu0 0.0
      %108 = vmatprep.subr.mxu0 0.0
      %109 = vmatpush1.xpose.msra.mxu0 0.0
      %110 = vmatprep.subr.mxu0 0.0
      %111 = vmatpush1.xpose.msra.mxu0 0.0
      %112 = vmatprep.subr.mxu0 0.0
      %113 = vmatpush1.xpose.msra.mxu0 0.0
      %114 = vmatprep.subr.mxu0 0.0
      %115 = vmatpush1.xpose.msra.mxu0 0.0
      %116 = vmatprep.subr.mxu0 0.0
      %117 = vmatpush1.xpose.msra.mxu0 0.0
      %118 = vmatprep.subr.mxu0 0.0
      %119 = vmatpush1.xpose.msra.mxu0 0.0
      %120 = vmatprep.subr.mxu0 0.0
      %121 = vmatpush1.xpose.msra.mxu0 0.0
      %122 = vmatprep.subr.mxu0 0.0
      %123 = vmatpush1.xpose.msra.mxu0 0.0
      %124 = vmatprep.subr.mxu0 0.0
      %125 = vmatpush1.xpose.msra.mxu0 0.0
      %126 = vmatprep.subr.mxu0 0.0
      %127 = vmatpush1.xpose.msra.mxu0 0.0
      %128 = vmatprep.subr.mxu0 0.0
      %129 = vmatpush1.xpose.msra.mxu0 0.0
      %130 = vmatprep.subr.mxu0 0.0
      %131 = vmatpush1.xpose.msra.mxu0 0.0
      %132 = vmatprep.subr.mxu0 0.0
      %133 = vmatpush1.xpose.msra.mxu0 0.0
      %134 = vmatprep.subr.mxu0 0.0
      %135 = vmatpush1.xpose.msra.mxu0 0.0
      %136 = vmatprep.subr.mxu0 0.0
      %137 = vmatpush1.xpose.msra.mxu0 0.0
      %138 = vmatprep.subr.mxu0 0.0
      %139 = vmatpush1.xpose.msra.mxu0 0.0
      %140 = vmatprep.subr.mxu0 0.0
      %141 = vmatpush1.xpose.msra.mxu0 0.0
      %142 = vmatprep.subr.mxu0 0.0
      %143 = vmatpush1.xpose.msra.mxu0 0.0
      %144 = vmatprep.subr.mxu0 0.0
      %145 = vmatpush1.xpose.msra.mxu0 0.0
      %146 = vmatprep.subr.mxu0 0.0
      %147 = vmatpush1.xpose.msra.mxu0 0.0
      %148 = vmatprep.mubr.f32.mxu0 0.0
      %149 = vmatmul.mubr.f32.gmra.mrb[0].mxu0 %v82
      %v150 = vpop.f32.mrb[0].mxu0
      %v151 = vadd.f32 0.0, %v150
      %v152 = vpop.f32.mrb[0].mxu0
      %153 = vdwg.mxu0
      %v154 = vmax.f32 %v151, -1.0
      %v155 = vmin.f32 %v154, 1.0
      %v156 = vlaneseq
      %v157 = vshrl.u32 %v156, 7
      %v158 = vlaneseq
      %v159 = vand.u32 %v158, 127
      %vm160 = vcmp.ne.s32.totalorder %v157, %v159
      %vm161 = vcmp.lt.s32.totalorder %v157, 2
      %vm162 = vmand %vm160, %vm161
      %vm163 = vcmp.lt.s32.totalorder %v159, 2
      %vm164 = vmand %vm162, %vm163
      %v165 = vsub.f32 1.0, %v155
      %v166 = vsub.f32 0.1, %v165
      %v167 = vmax.f32 %v166, 0.0
      %v168 = vsel %vm164, %v167, 0.0
      %vm169 = vcmask 64512
      %v170 = vsel %vm169, %v168, 0.0
      %171 = vadd.xlane.f32.xlu0 %v170
      %v172 = vpop.xlane.xlu0 %171
      %v173 = vrot.slane %v172, 4
      %v174 = vadd.f32 %v172, %v173
      %v175 = vrot.slane %v174, 2
      %v176 = vadd.f32 %v174, %v175
      %v177 = vrot.slane %v176, 1
      %v178 = vadd.f32 %v176, %v177
      %s179 = vtos %v178
      %v180 = vrcp.pop 2.0
      %s181 = vtos %v180
      %s182 = smul.f32 %s179, %s181
      %v183 = vstv %s182
      %v184 = vadd.f32 %v183, 0.0
      %vm185 = vcmask 0
      %186 = vst.msk [vmem:[#allocation5] sm:$0x1] %vm185, %v184
    $region33: #{tpu_custom_call.1} parent=1 // pred_fallthru
      _
    %v187 = vld [vmem:[#allocation9] sm:$0xff]
    %v188 = vld [vmem:[#allocation9 + $0x8] sm:$0xff]
    %v189 = vld [vmem:[#allocation6] sm:$0xff]
    %v190 = vld [vmem:[#allocation6 + $0x8] sm:$0xff]
    %v191 = vld [vmem:[#allocation11] sm:$0xff]
    %v192 = vld [vmem:[#allocation11 + $0x8] sm:$0xff]
    %v193 = vld [vmem:[#allocation11 + $0x10] sm:$0xff]
    %v194 = vld [vmem:[#allocation11 + $0x18] sm:$0xff]
    %v195 = vld [vmem:[#allocation11 + $0x20] sm:$0xff]
    %v196 = vld [vmem:[#allocation11 + $0x28] sm:$0xff]
    %v197 = vld [vmem:[#allocation11 + $0x30] sm:$0xff]
    %v198 = vld [vmem:[#allocation11 + $0x38] sm:$0xff]
    %v199 = vld [vmem:[#allocation11 + $0x40] sm:$0xff]
    %v200 = vld [vmem:[#allocation11 + $0x48] sm:$0xff]
    %v201 = vld [vmem:[#allocation11 + $0x50] sm:$0xff]
    %v202 = vld [vmem:[#allocation11 + $0x58] sm:$0xff]
    %v203 = vld [vmem:[#allocation11 + $0x60] sm:$0xff]
    %v204 = vld [vmem:[#allocation11 + $0x68] sm:$0xff]
    %v205 = vld [vmem:[#allocation11 + $0x70] sm:$0xff]
    %v206 = vld [vmem:[#allocation11 + $0x78] sm:$0xff]
    %v207 = vld [vmem:[#allocation11 + $0x80] sm:$0xff]
    %v208 = vld [vmem:[#allocation11 + $0x88] sm:$0xff]
    %v209 = vld [vmem:[#allocation11 + $0x90] sm:$0xff]
    %v210 = vld [vmem:[#allocation11 + $0x98] sm:$0xff]
    %v211 = vld [vmem:[#allocation11 + $0xa0] sm:$0xff]
    %v212 = vld [vmem:[#allocation11 + $0xa8] sm:$0xff]
    %v213 = vld [vmem:[#allocation11 + $0xb0] sm:$0xff]
    %v214 = vld [vmem:[#allocation11 + $0xb8] sm:$0xff]
    %v215 = vld [vmem:[#allocation11 + $0xc0] sm:$0xff]
    %v216 = vld [vmem:[#allocation11 + $0xc8] sm:$0xff]
    %v217 = vld [vmem:[#allocation11 + $0xd0] sm:$0xff]
    %v218 = vld [vmem:[#allocation11 + $0xd8] sm:$0xff]
    %v219 = vld [vmem:[#allocation11 + $0xe0] sm:$0xff]
    %v220 = vld [vmem:[#allocation11 + $0xe8] sm:$0xff]
    %v221 = vld [vmem:[#allocation11 + $0xf0] sm:$0xff]
    %v222 = vld [vmem:[#allocation11 + $0xf8] sm:$0xff]
    %v223 = vld [vmem:[#allocation11 + $0x100] sm:$0xff]
    %v224 = vld [vmem:[#allocation11 + $0x108] sm:$0xff]
    %v225 = vld [vmem:[#allocation11 + $0x110] sm:$0xff]
    %v226 = vld [vmem:[#allocation11 + $0x118] sm:$0xff]
    %v227 = vld [vmem:[#allocation11 + $0x120] sm:$0xff]
    %v228 = vld [vmem:[#allocation11 + $0x128] sm:$0xff]
    %v229 = vld [vmem:[#allocation11 + $0x130] sm:$0xff]
    %v230 = vld [vmem:[#allocation11 + $0x138] sm:$0xff]
    %v231 = vld [vmem:[#allocation11 + $0x140] sm:$0xff]
    %v232 = vld [vmem:[#allocation11 + $0x148] sm:$0xff]
    %v233 = vld [vmem:[#allocation11 + $0x150] sm:$0xff]
    %v234 = vld [vmem:[#allocation11 + $0x158] sm:$0xff]
    %v235 = vld [vmem:[#allocation11 + $0x160] sm:$0xff]
    %v236 = vld [vmem:[#allocation11 + $0x168] sm:$0xff]
    %v237 = vld [vmem:[#allocation11 + $0x170] sm:$0xff]
    %v238 = vld [vmem:[#allocation11 + $0x178] sm:$0xff]
    %v239 = vld [vmem:[#allocation11 + $0x180] sm:$0xff]
    %v240 = vld [vmem:[#allocation11 + $0x188] sm:$0xff]
    %v241 = vld [vmem:[#allocation11 + $0x190] sm:$0xff]
    %v242 = vld [vmem:[#allocation11 + $0x198] sm:$0xff]
    %v243 = vld [vmem:[#allocation11 + $0x1a0] sm:$0xff]
    %v244 = vld [vmem:[#allocation11 + $0x1a8] sm:$0xff]
    %v245 = vld [vmem:[#allocation11 + $0x1b0] sm:$0xff]
    %v246 = vld [vmem:[#allocation11 + $0x1b8] sm:$0xff]
    %v247 = vld [vmem:[#allocation11 + $0x1c0] sm:$0xff]
    %v248 = vld [vmem:[#allocation11 + $0x1c8] sm:$0xff]
    %v249 = vld [vmem:[#allocation11 + $0x1d0] sm:$0xff]
    %v250 = vld [vmem:[#allocation11 + $0x1d8] sm:$0xff]
    %v251 = vld [vmem:[#allocation11 + $0x1e0] sm:$0xff]
    %v252 = vld [vmem:[#allocation11 + $0x1e8] sm:$0xff]
    %v253 = vld [vmem:[#allocation11 + $0x1f0] sm:$0xff]
    %v254 = vld [vmem:[#allocation11 + $0x1f8] sm:$0xff]
    %255 = vmatprep.subr.mxu0 %v192
    %256 = vmatpush1.msra.mxu0 %v191
    %257 = vmatprep.subr.mxu0 %v194
    %258 = vmatpush1.msra.mxu0 %v193
    %259 = vmatprep.subr.mxu0 %v196
    %260 = vmatpush1.msra.mxu0 %v195
    %261 = vmatprep.subr.mxu0 %v198
    %262 = vmatpush1.msra.mxu0 %v197
    %263 = vmatprep.subr.mxu0 %v200
    %264 = vmatpush1.msra.mxu0 %v199
    %265 = vmatprep.subr.mxu0 %v202
    %266 = vmatpush1.msra.mxu0 %v201
    %267 = vmatprep.subr.mxu0 %v204
    %268 = vmatpush1.msra.mxu0 %v203
    %269 = vmatprep.subr.mxu0 %v206
    %270 = vmatpush1.msra.mxu0 %v205
    %271 = vmatprep.subr.mxu0 %v208
    %272 = vmatpush1.msra.mxu0 %v207
    %273 = vmatprep.subr.mxu0 %v210
    %274 = vmatpush1.msra.mxu0 %v209
    %275 = vmatprep.subr.mxu0 %v212
    %276 = vmatpush1.msra.mxu0 %v211
    %277 = vmatprep.subr.mxu0 %v214
    %278 = vmatpush1.msra.mxu0 %v213
    %279 = vmatprep.subr.mxu0 %v216
    %280 = vmatpush1.msra.mxu0 %v215
    %281 = vmatprep.subr.mxu0 %v218
    %282 = vmatpush1.msra.mxu0 %v217
    %283 = vmatprep.subr.mxu0 %v220
    %284 = vmatpush1.msra.mxu0 %v219
    %285 = vmatprep.subr.mxu0 %v222
    %286 = vmatpush1.msra.mxu0 %v221
    %287 = vmatprep.subr.mxu0 %v224
    %288 = vmatpush1.msra.mxu0 %v223
    %289 = vmatprep.subr.mxu0 %v226
    %290 = vmatpush1.msra.mxu0 %v225
    %291 = vmatprep.subr.mxu0 %v228
    %292 = vmatpush1.msra.mxu0 %v227
    %293 = vmatprep.subr.mxu0 %v230
    %294 = vmatpush1.msra.mxu0 %v229
    %295 = vmatprep.subr.mxu0 %v232
    %296 = vmatpush1.msra.mxu0 %v231
    %297 = vmatprep.subr.mxu0 %v234
    %298 = vmatpush1.msra.mxu0 %v233
    %299 = vmatprep.subr.mxu0 %v236
    %300 = vmatpush1.msra.mxu0 %v235
    %301 = vmatprep.subr.mxu0 %v238
    %302 = vmatpush1.msra.mxu0 %v237
    %303 = vmatprep.subr.mxu0 %v240
    %304 = vmatpush1.msra.mxu0 %v239
    %305 = vmatprep.subr.mxu0 %v242
    %306 = vmatpush1.msra.mxu0 %v241
    %307 = vmatprep.subr.mxu0 %v244
    %308 = vmatpush1.msra.mxu0 %v243
    %309 = vmatprep.subr.mxu0 %v246
    %310 = vmatpush1.msra.mxu0 %v245
    %311 = vmatprep.subr.mxu0 %v248
    %312 = vmatpush1.msra.mxu0 %v247
    %313 = vmatprep.subr.mxu0 %v250
    %314 = vmatpush1.msra.mxu0 %v249
    %315 = vmatprep.subr.mxu0 %v252
    %316 = vmatpush1.msra.mxu0 %v251
    %317 = vmatprep.subr.mxu0 %v254
    %318 = vmatpush1.msra.mxu0 %v253
    %319 = vmatprep.mubr.f32.mxu0 %v188
    %320 = vmatmul.mubr.f32.gmra.mrb[0].mxu0 %v187
    %v321 = vpop.f32.mrb[0].mxu0
    %v322 = vadd.f32 0.0, %v321
    %v323 = vpop.f32.mrb[0].mxu0
    %v324 = vadd.f32 0.0, %v323
    %325 = vdwg.mxu0
    %v326 = vsub.f32 %v187, %v322
    %v327 = vsub.f32 %v188, %v324
    %v328 = vmul.f32 %v326, %v326
    %v329 = vmul.f32 %v327, %v327
    %330 = vmatprep.subr.mxu0 %v192
    %331 = vmatpush1.msra.mxu0 %v191
    %332 = vmatprep.subr.mxu0 %v194
    %333 = vmatpush1.msra.mxu0 %v193
    %334 = vmatprep.subr.mxu0 %v196
    %335 = vmatpush1.msra.mxu0 %v195
    %336 = vmatprep.subr.mxu0 %v198
    %337 = vmatpush1.msra.mxu0 %v197
    %338 = vmatprep.subr.mxu0 %v200
    %339 = vmatpush1.msra.mxu0 %v199
    %340 = vmatprep.subr.mxu0 %v202
    %341 = vmatpush1.msra.mxu0 %v201
    %342 = vmatprep.subr.mxu0 %v204
    %343 = vmatpush1.msra.mxu0 %v203
    %344 = vmatprep.subr.mxu0 %v206
    %345 = vmatpush1.msra.mxu0 %v205
    %346 = vmatprep.subr.mxu0 %v208
    %347 = vmatpush1.msra.mxu0 %v207
    %348 = vmatprep.subr.mxu0 %v210
    %349 = vmatpush1.msra.mxu0 %v209
    %350 = vmatprep.subr.mxu0 %v212
    %351 = vmatpush1.msra.mxu0 %v211
    %352 = vmatprep.subr.mxu0 %v214
    %353 = vmatpush1.msra.mxu0 %v213
    %354 = vmatprep.subr.mxu0 %v216
    %355 = vmatpush1.msra.mxu0 %v215
    %356 = vmatprep.subr.mxu0 %v218
    %357 = vmatpush1.msra.mxu0 %v217
    %358 = vmatprep.subr.mxu0 %v220
    %359 = vmatpush1.msra.mxu0 %v219
    %360 = vmatprep.subr.mxu0 %v222
    %361 = vmatpush1.msra.mxu0 %v221
    %362 = vmatprep.subr.mxu0 %v224
    %363 = vmatpush1.msra.mxu0 %v223
    %364 = vmatprep.subr.mxu0 %v226
    %365 = vmatpush1.msra.mxu0 %v225
    %366 = vmatprep.subr.mxu0 %v228
    %367 = vmatpush1.msra.mxu0 %v227
    %368 = vmatprep.subr.mxu0 %v230
    %369 = vmatpush1.msra.mxu0 %v229
    %370 = vmatprep.subr.mxu0 %v232
    %371 = vmatpush1.msra.mxu0 %v231
    %372 = vmatprep.subr.mxu0 %v234
    %373 = vmatpush1.msra.mxu0 %v233
    %374 = vmatprep.subr.mxu0 %v236
    %375 = vmatpush1.msra.mxu0 %v235
    %376 = vmatprep.subr.mxu0 %v238
    %377 = vmatpush1.msra.mxu0 %v237
    %378 = vmatprep.subr.mxu0 %v240
    %379 = vmatpush1.msra.mxu0 %v239
    %380 = vmatprep.subr.mxu0 %v242
    %381 = vmatpush1.msra.mxu0 %v241
    %382 = vmatprep.subr.mxu0 %v244
    %383 = vmatpush1.msra.mxu0 %v243
    %384 = vmatprep.subr.mxu0 %v246
    %385 = vmatpush1.msra.mxu0 %v245
    %386 = vmatprep.subr.mxu0 %v248
    %387 = vmatpush1.msra.mxu0 %v247
    %388 = vmatprep.subr.mxu0 %v250
    %389 = vmatpush1.msra.mxu0 %v249
    %390 = vmatprep.subr.mxu0 %v252
    %391 = vmatpush1.msra.mxu0 %v251
    %392 = vmatprep.subr.mxu0 %v254
    %393 = vmatpush1.msra.mxu0 %v253
    %394 = vmatprep.mubr.f32.mxu0 %v329
    %395 = vmatmul.mubr.f32.gmra.mrb[0].mxu0 %v328
    %v396 = vpop.f32.mrb[0].mxu0
    %v397 = vadd.f32 1e-06, %v396
    %v398 = vpop.f32.mrb[0].mxu0
    %v399 = vadd.f32 1e-06, %v398
    %400 = vdwg.mxu0
    %v401 = vrsqrt.pop %v397
    %v402 = vmul.f32 %v397, %v401
    %vm403 = vcmp.eq.f32.partialorder %v397, inf
    %v404 = vsel %vm403, %v397, %v402
    %vm405 = vcmp.eq.f32.partialorder %v397, 0.0
    %v406 = vand.u32 %v397, 2147483648
    %v407 = vsel %vm405, %v406, %v404
    %v408 = vrsqrt.pop %v399
    %v409 = vmul.f32 %v399, %v408
    %vm410 = vcmp.eq.f32.partialorder %v399, inf
    %v411 = vsel %vm410, %v399, %v409
    %vm412 = vcmp.eq.f32.partialorder %v399, 0.0
    %v413 = vand.u32 %v399, 2147483648
    %v414 = vsel %vm412, %v413, %v411
    %v415 = vsub.f32 %v189, %v187
    %v416 = vsub.f32 %v190, %v188
    %v417 = vand.u32 2147483647, %v415
    %v418 = vand.u32 2147483647, %v416
    %v419 = vld [vmem:[#allocation2] sm:$0xff]
    %v420 = vld [vmem:[#allocation2 + $0x8] sm:$0xff]
    %v421 = vadd.f32 %v419, %v417
    %v422 = vadd.f32 %v420, %v418
    %423 = vst [vmem:[#allocation2] sm:$0xff] %v421
    %424 = vst [vmem:[#allocation2 + $0x8] sm:$0xff] %v422
    %v425 = vld [vmem:[#allocation3] sm:$0xff]
    %v426 = vld [vmem:[#allocation3 + $0x8] sm:$0xff]
    %v427 = vadd.f32 %v425, %v407
    %v428 = vadd.f32 %v426, %v414
    %429 = vst [vmem:[#allocation3] sm:$0xff] %v427
    %430 = vst [vmem:[#allocation3 + $0x8] sm:$0xff] %v428
    %v431 = vld [vmem:[#allocation4] sm:$0xff]
    %v432 = vld [vmem:[#allocation4 + $0x8] sm:$0xff]
    %v433 = vmul.f32 %v417, %v407
    %v434 = vmul.f32 %v418, %v414
    %v435 = vadd.f32 %v431, %v433
    %v436 = vadd.f32 %v432, %v434
    %437 = vst [vmem:[#allocation4] sm:$0xff] %v435
    %438 = vst [vmem:[#allocation4 + $0x8] sm:$0xff] %v436
    // Predicated region
    $region34: #{tpu_custom_call.1} parent=1 // pred_check
      %p439 = pneg %p55
    $region35: #{tpu_custom_call.1} parent=1 // pred_check_branch
      %441 = sbr.rel (%p439) target = $region37
    $region36: #{tpu_custom_call.1} parent=1 // pred_region
      %v442 = vld [vmem:[#allocation2] sm:$0xff]
      %v443 = vld [vmem:[#allocation2 + $0x8] sm:$0xff]
      %v444 = vadd.f32 %v442, %v443
      %445 = vadd.xlane.f32.xlu0 %v444
      %v446 = vpop.xlane.xlu0 %445
      %v447 = vrot.slane %v446, 4
      %v448 = vadd.f32 %v446, %v447
      %v449 = vrot.slane %v448, 2
      %v450 = vadd.f32 %v448, %v449
      %v451 = vrot.slane %v450, 1
      %v452 = vadd.f32 %v450, %v451
      %s453 = vtos %v452
      %v454 = vld [vmem:[#allocation3] sm:$0xff]
      %v455 = vld [vmem:[#allocation3 + $0x8] sm:$0xff]
      %v456 = vadd.f32 %v454, %v455
      %457 = vadd.xlane.f32.xlu0 %v456
      %v458 = vpop.xlane.xlu0 %457
      %v459 = vrot.slane %v458, 4
      %v460 = vadd.f32 %v458, %v459
      %v461 = vrot.slane %v460, 2
      %v462 = vadd.f32 %v460, %v461
      %v463 = vrot.slane %v462, 1
      %v464 = vadd.f32 %v462, %v463
      %s465 = vtos %v464
      %v466 = vld [vmem:[#allocation4] sm:$0xff]
      %v467 = vld [vmem:[#allocation4 + $0x8] sm:$0xff]
      %v468 = vadd.f32 %v466, %v467
      %469 = vadd.xlane.f32.xlu0 %v468
      %v470 = vpop.xlane.xlu0 %469
      %v471 = vrot.slane %v470, 4
      %v472 = vadd.f32 %v470, %v471
      %v473 = vrot.slane %v472, 2
      %v474 = vadd.f32 %v472, %v473
      %v475 = vrot.slane %v474, 1
      %v476 = vadd.f32 %v474, %v475
      %s477 = vtos %v476
      %v478 = vrcp.pop 2048.0
      %s479 = vtos %v478
      %s480 = smul.f32 %s453, %s479
      %s481 = smul.f32 %s477, 2.0
      %v482 = vstv %s465
      %v483 = vrcp.pop %v482
      %s484 = vtos %v483
      %s485 = smul.f32 %s481, %s484
      %s486 = sadd.f32 %s480, %s485
      %v487 = vld [vmem:[#allocation5] sm:$0x1]
      %v488 = vmul.f32 %v487, 0.5
      %v489 = vstv %s486
      %v490 = vadd.f32 %v489, %v488
      %vm491 = vcmask 0
      %492 = vst.msk [vmem:[#allocation12] sm:$0x1] %vm491, %v490
    $region37: #{tpu_custom_call.1} parent=1 // pred_fallthru
      _
    // Predicated region
    $region38: #{tpu_custom_call.1} parent=1 // pred_check
      _
    $region39: #{tpu_custom_call.1} parent=1 // pred_check_branch
      %494 = sbr.rel (0) target = $region41
    $region40: #{tpu_custom_call.1} parent=1 // pred_region
      %s496 = ssub.s32 16, 16
      %497 = vsyncadd [#allocation8], %s496
      %s499 = sshll.u32 [#allocation12], 4
      %s500 = int_to_ptr.vmem [resolvable:$true] %s499
      %502 = dma.vmem_to_hbm [thread:$0]  %s500, 16, %s4, [#allocation8]
    $region41: #{tpu_custom_call.1} parent=1 // pred_fallthru
      _
    // Predicated region
    $region42: #{tpu_custom_call.1} parent=1 // pred_check
      _
    $region43: #{tpu_custom_call.1} parent=1 // pred_check_branch
      %504 = sbr.rel (0) target = $region45
    $region44: #{tpu_custom_call.1} parent=1 // pred_region
      %505 = dma.done [#allocation8], 16
    $region45: #{tpu_custom_call.1} parent=1 // pred_fallthru
      _
    %506 = vsyncpa [#allocation7], 1
    %507 = vsyncpa [#allocation10], 1
    %508 = vsyncpa [#allocation8], 1

</llo_original>
